<compile_context>
chip_gen: v7x
topology: tpu7x:2x2x1
jax: 0.10.0
libtpu: 0.0.40
codegen_flags: <defaults>
</compile_context>

<pallas_src>
import functools

import jax
import jax.numpy as jnp
import numpy as np
from jax.experimental import pallas as pl
from jax.experimental.pallas import tpu as pltpu


def _dwsep_kernel(x_ref, wt_ref, b1_ref, pw_ref, b2_ref, out_ref,
                  *, th, stride, cin, we):
    """One (batch sample, output-row tile) per grid step.

    x_ref  : (1, 1, rb, Wp*Cin)   packed zero-padded input rows (halo incl.)
    wt_ref : (9, WE*Cin)          depthwise taps, BN1 scale folded, W-tiled
    b1_ref : (1, WE*Cin)          BN1 bias, W-tiled
    pw_ref : (WE*Cin, Wo*Cout)    pointwise weights (BN2 scale + W-subsample folded)
    b2_ref : (1, Wo*Cout)         BN2 bias, W-tiled
    out_ref: (1, TH, Wo*Cout)     lane-dense packed output
    """
    he = (th - 1) * stride + 1          # stride-1 row extent of this tile
    lk = we * cin                       # packed lane width of the taps

    xt = x_ref[0, 0]                    # (rb, Wp*Cin)

    # --- depthwise 3x3: 9 stride-1 taps on lane-packed data (VPU dense) -----
    acc = jnp.zeros((he, lk), jnp.float32)
    for kh in range(3):
        rows = xt[kh:kh + he, :]                         # stride-1 sublane slice
        for kw in range(3):
            patch = rows[:, kw * cin: kw * cin + lk]     # stride-1 lane slice
            acc = acc + patch.astype(jnp.float32) * wt_ref[kh * 3 + kw, :]

    # --- stride>1: ONE subsample along H (W-subsample folded into pw_ref) ---
    if stride > 1:
        acc = jax.lax.slice(acc, (0, 0), (he, lk), (stride, 1))   # (th, lk)

    # --- BN1 bias + ReLU (scale already folded into the taps) ---------------
    h = jnp.maximum(acc + b1_ref[0, :], 0.0)             # (th, lk)

    # --- pointwise 1x1 conv: single lane-dense MXU matmul --------------------
    y = jnp.dot(h, pw_ref[...], preferred_element_type=jnp.float32)

    # --- BN2 bias + ReLU, unmasked lane-dense store --------------------------
    out_ref[0] = jnp.maximum(y + b2_ref[0, :], 0.0)


def depthwise_separable_conv(x_nchw, dw_w, pw_w,
                             bn1_gamma, bn1_beta, bn1_mean, bn1_var,
                             bn2_gamma, bn2_beta, bn2_mean, bn2_var,
                             *, stride=1, eps=1e-5, row_tile=8,
                             x_dtype=jnp.float32):
    """x_nchw: (N, Cin, H, W) -> (N, Cout, Ho, Wo), eval-mode BN."""
    N, Cin, H, W = x_nchw.shape
    Cout = pw_w.shape[0]

    Ho = (H + 2 - 3) // stride + 1
    Wo = (W + 2 - 3) // stride + 1
    Hp, Wp = H + 2, W + 2
    WE = (Wo - 1) * stride + 1          # stride-1 W extent feeding the taps
    LK = WE * Cin                       # packed K width of the matmul
    LN = Wo * Cout                      # packed lane width of the output

    # output-row tile: a divisor of Ho that is 8-sublane aligned (or all of Ho)
    TH = Ho
    for d in range(min(row_tile, Ho), 0, -1):
        if Ho % d == 0 and (d % 8 == 0 or d == Ho):
            TH = d
            break
    nt = Ho // TH
    rb = (TH - 1) * stride + 3          # padded-input rows per tile (with halo)

    f32 = jnp.float32

    # ---- fold BatchNorm (eval mode) into the conv weights / biases ----------
    s1 = bn1_gamma.astype(f32) / jnp.sqrt(bn1_var.astype(f32) + eps)     # (Cin,)
    b1 = bn1_beta.astype(f32) - bn1_mean.astype(f32) * s1
    s2 = bn2_gamma.astype(f32) / jnp.sqrt(bn2_var.astype(f32) + eps)     # (Cout,)
    b2 = bn2_beta.astype(f32) - bn2_mean.astype(f32) * s2

    # depthwise taps: (Cin,1,3,3) -> (9, Cin) with BN1 scale folded, tiled to WE
    dws = dw_w[:, 0, :, :].astype(f32) * s1[:, None, None]               # (Cin,3,3)
    w9 = jnp.transpose(dws, (1, 2, 0)).reshape(9, Cin)                   # row=kh*3+kw
    wt = jnp.tile(w9, (1, WE))                                           # (9, LK)
    b1p = jnp.tile(b1, WE).reshape(1, LK)

    # pointwise weights: (Cout,Cin,1,1) -> lane-packed matrix that also performs
    # the stride-W subsample:
    #   pw_bd[w*Cin+ci, j*Cout+co] = pw[co,ci]*s2[co]  iff  w == j*stride
    pwk = jnp.transpose(pw_w[:, :, 0, 0].astype(f32) * s2[:, None], (1, 0))  # (Cin,Cout)
    jcol = jnp.arange(Wo)
    sel = jnp.zeros((WE, Wo), f32).at[jcol * stride, jcol].set(1.0)
    pw_bd = (sel[:, None, :, None] * pwk[None, :, None, :]).reshape(LK, LN)
    b2p = jnp.tile(b2, Wo).reshape(1, LN)
    # TODO(synk): for large Wo*C the kron-style pw_bd grows ~Wo^2; switch the 1x1
    # conv to a channel-padded per-pixel matmul at real MobileNet spatial sizes.

    # ---- input glue: NCHW -> packed (N, Hp, Wp*Cin), pad, duplicate halos ---
    # (For a full network, keep activations in this packed layout between layers
    #  and do the NCHW transposes once at the network boundary.)
    x_nhwc = jnp.transpose(x_nchw, (0, 2, 3, 1))
    x_pad = jnp.pad(x_nhwc, ((0, 0), (1, 1), (1, 1), (0, 0)))            # (N,Hp,Wp,Cin)
    x_pack = x_pad.reshape(N, Hp, Wp * Cin).astype(x_dtype)
    x_tiles = jnp.stack(
        [x_pack[:, t * TH * stride: t * TH * stride + rb, :] for t in range(nt)],
        axis=1)                                                          # (N,nt,rb,Wp*Cin)

    kernel = functools.partial(_dwsep_kernel, th=TH, stride=stride,
                               cin=Cin, we=WE)

    out_packed = pl.pallas_call(
        kernel,
        out_shape=jax.ShapeDtypeStruct((N, Ho, LN), f32),
        grid_spec=pltpu.PrefetchScalarGridSpec(
            num_scalar_prefetch=0,
            grid=(N, nt),
            in_specs=[
                pl.BlockSpec((1, 1, rb, Wp * Cin), lambda n, r: (n, r, 0, 0)),
                pl.BlockSpec((9, LK), lambda n, r: (0, 0)),
                pl.BlockSpec((1, LK), lambda n, r: (0, 0)),
                pl.BlockSpec((LK, LN), lambda n, r: (0, 0)),
                pl.BlockSpec((1, LN), lambda n, r: (0, 0)),
            ],
            out_specs=pl.BlockSpec((1, TH, LN), lambda n, r: (n, r, 0)),
        ),
        compiler_params=pltpu.CompilerParams(
            dimension_semantics=("parallel", "parallel")),
    )(x_tiles, wt, b1p, pw_bd, b2p)

    # un-merge (Wo, Cout) in the wrapper; return NCHW like the PyTorch module
    return jnp.transpose(out_packed.reshape(N, Ho, Wo, Cout), (0, 3, 1, 2))


def _reference(x_nchw, dw_w, pw_w,
               bn1_gamma, bn1_beta, bn1_mean, bn1_var,
               bn2_gamma, bn2_beta, bn2_mean, bn2_var,
               *, stride=1, eps=1e-5):
    """Pure-JAX reference (eval-mode BN), NCHW like PyTorch."""
    Cin = x_nchw.shape[1]
    out = jax.lax.conv_general_dilated(
        x_nchw, dw_w, window_strides=(stride, stride), padding=((1, 1), (1, 1)),
        dimension_numbers=("NCHW", "OIHW", "NCHW"), feature_group_count=Cin)
    out = (out - bn1_mean[None, :, None, None]) / jnp.sqrt(
        bn1_var[None, :, None, None] + eps)
    out = out * bn1_gamma[None, :, None, None] + bn1_beta[None, :, None, None]
    out = jnp.maximum(out, 0.0)
    out = jax.lax.conv_general_dilated(
        out, pw_w, window_strides=(1, 1), padding="VALID",
        dimension_numbers=("NCHW", "OIHW", "NCHW"))
    out = (out - bn2_mean[None, :, None, None]) / jnp.sqrt(
        bn2_var[None, :, None, None] + eps)
    out = out * bn2_gamma[None, :, None, None] + bn2_beta[None, :, None, None]
    return jnp.maximum(out, 0.0)


if __name__ == "__main__":
    key = jax.random.PRNGKey(0)
    keys = jax.random.split(key, 11)

    N, Cin, H, W, Cout = 2, 8, 16, 16, 16

    x = jax.random.normal(keys[0], (N, Cin, H, W), jnp.float32)
    dw_w = jax.random.normal(keys[1], (Cin, 1, 3, 3), jnp.float32) * 0.2
    pw_w = jax.random.normal(keys[2], (Cout, Cin, 1, 1), jnp.float32) * 0.2
    bn1_gamma = 1.0 + 0.1 * jax.random.normal(keys[3], (Cin,), jnp.float32)
    bn1_beta = 0.1 * jax.random.normal(keys[4], (Cin,), jnp.float32)
    bn1_mean = 0.1 * jax.random.normal(keys[5], (Cin,), jnp.float32)
    bn1_var = jnp.abs(jax.random.normal(keys[6], (Cin,), jnp.float32)) + 0.5
    bn2_gamma = 1.0 + 0.1 * jax.random.normal(keys[7], (Cout,), jnp.float32)
    bn2_beta = 0.1 * jax.random.normal(keys[8], (Cout,), jnp.float32)
    bn2_mean = 0.1 * jax.random.normal(keys[9], (Cout,), jnp.float32)
    bn2_var = jnp.abs(jax.random.normal(keys[10], (Cout,), jnp.float32)) + 0.5

    params = (dw_w, pw_w, bn1_gamma, bn1_beta, bn1_mean, bn1_var,
              bn2_gamma, bn2_beta, bn2_mean, bn2_var)

    # stride = 1, f32
    out1 = jax.block_until_ready(depthwise_separable_conv(x, *params, stride=1))
    ref1 = _reference(x, *params, stride=1)
    np.testing.assert_allclose(np.asarray(out1), np.asarray(ref1),
                               rtol=1e-4, atol=1e-4)

    # stride = 2, f32 (single H-subsample; W-subsample folded into the matmul)
    out2 = jax.block_until_ready(depthwise_separable_conv(x, *params, stride=2))
    ref2 = _reference(x, *params, stride=2)
    np.testing.assert_allclose(np.asarray(out2), np.asarray(ref2),
                               rtol=1e-4, atol=1e-4)

    # stride = 1, bf16 input activations (v6e/v7x DMA-byte saver), f32 accumulate
    out3 = jax.block_until_ready(
        depthwise_separable_conv(x, *params, stride=1, x_dtype=jnp.bfloat16))
    np.testing.assert_allclose(np.asarray(out3), np.asarray(ref1),
                               rtol=5e-2, atol=5e-2)

    print("KERNEL_OK")
</pallas_src>

<mosaic_0001>
module attributes {stable_mosaic.version = 11 : i64} {
  func.func @_dwsep_kernel(%arg0: i32, %arg1: i32, %arg2: memref<1x1x10x144xf32, #tpu.memory_space<vmem>>, %arg3: memref<9x128xf32, #tpu.memory_space<vmem>>, %arg4: memref<1x128xf32, #tpu.memory_space<vmem>>, %arg5: memref<128x256xf32, #tpu.memory_space<vmem>>, %arg6: memref<1x256xf32, #tpu.memory_space<vmem>>, %arg7: memref<1x8x256xf32, #tpu.memory_space<vmem>>) attributes {dimension_semantics = [#tpu.dimension_semantics<parallel>, #tpu.dimension_semantics<parallel>], iteration_bounds = array<i64: 2, 2>, scalar_prefetch = 0 : i64, scratch_operands = 0 : i64, tpu.core_type = #tpu.core_type<tc>, window_params = [{transform_indices = @transform_0, window_bounds = array<i64: 1, 1, 10, 144>}, {pipeline_mode = #tpu.pipeline_mode<synchronous>, transform_indices = @transform_1, window_bounds = array<i64: 9, 128>}, {pipeline_mode = #tpu.pipeline_mode<synchronous>, transform_indices = @transform_2, window_bounds = array<i64: 1, 128>}, {pipeline_mode = #tpu.pipeline_mode<synchronous>, transform_indices = @transform_3, window_bounds = array<i64: 128, 256>}, {pipeline_mode = #tpu.pipeline_mode<synchronous>, transform_indices = @transform_4, window_bounds = array<i64: 1, 256>}, {transform_indices = @transform_5, window_bounds = array<i64: 1, 8, 256>}]} {
    %c0 = arith.constant 0 : index
    %c0_0 = arith.constant 0 : index
    %c0_1 = arith.constant 0 : index
    %c0_2 = arith.constant 0 : index
    %0 = vector.load %arg2[%c0, %c0_0, %c0_1, %c0_2] : memref<1x1x10x144xf32, #tpu.memory_space<vmem>>, vector<1x1x10x144xf32>
    %1 = vector.shape_cast %0 : vector<1x1x10x144xf32> to vector<10x144xf32>
    %cst = arith.constant 0.000000e+00 : f32
    %2 = vector.broadcast %cst : f32 to vector<8x128xf32>
    %3 = vector.extract_strided_slice %1 {offsets = [0, 0], sizes = [8, 144], strides = [1, 1]} : vector<10x144xf32> to vector<8x144xf32>
    %4 = vector.extract_strided_slice %3 {offsets = [0, 0], sizes = [8, 128], strides = [1, 1]} : vector<8x144xf32> to vector<8x128xf32>
    %c0_3 = arith.constant 0 : index
    %c0_4 = arith.constant 0 : index
    %5 = vector.load %arg3[%c0_3, %c0_4] : memref<9x128xf32, #tpu.memory_space<vmem>>, vector<1x128xf32>
    %6 = vector.shape_cast %5 : vector<1x128xf32> to vector<128xf32>
    %7 = vector.shape_cast %6 : vector<128xf32> to vector<1x128xf32>
    %8 = vector.broadcast %7 : vector<1x128xf32> to vector<8x128xf32>
    %9 = arith.mulf %4, %8 : vector<8x128xf32>
    %10 = arith.addf %2, %9 : vector<8x128xf32>
    %11 = vector.extract_strided_slice %3 {offsets = [0, 8], sizes = [8, 128], strides = [1, 1]} : vector<8x144xf32> to vector<8x128xf32>
    %c1 = arith.constant 1 : index
    %c0_5 = arith.constant 0 : index
    %12 = vector.load %arg3[%c1, %c0_5] : memref<9x128xf32, #tpu.memory_space<vmem>>, vector<1x128xf32>
    %13 = vector.shape_cast %12 : vector<1x128xf32> to vector<128xf32>
    %14 = vector.shape_cast %13 : vector<128xf32> to vector<1x128xf32>
    %15 = vector.broadcast %14 : vector<1x128xf32> to vector<8x128xf32>
    %16 = arith.mulf %11, %15 : vector<8x128xf32>
    %17 = arith.addf %10, %16 : vector<8x128xf32>
    %18 = vector.extract_strided_slice %3 {offsets = [0, 16], sizes = [8, 128], strides = [1, 1]} : vector<8x144xf32> to vector<8x128xf32>
    %c2 = arith.constant 2 : index
    %c0_6 = arith.constant 0 : index
    %19 = vector.load %arg3[%c2, %c0_6] : memref<9x128xf32, #tpu.memory_space<vmem>>, vector<1x128xf32>
    %20 = vector.shape_cast %19 : vector<1x128xf32> to vector<128xf32>
    %21 = vector.shape_cast %20 : vector<128xf32> to vector<1x128xf32>
    %22 = vector.broadcast %21 : vector<1x128xf32> to vector<8x128xf32>
    %23 = arith.mulf %18, %22 : vector<8x128xf32>
    %24 = arith.addf %17, %23 : vector<8x128xf32>
    %25 = vector.extract_strided_slice %1 {offsets = [1, 0], sizes = [8, 144], strides = [1, 1]} : vector<10x144xf32> to vector<8x144xf32>
    %26 = vector.extract_strided_slice %25 {offsets = [0, 0], sizes = [8, 128], strides = [1, 1]} : vector<8x144xf32> to vector<8x128xf32>
    %c3 = arith.constant 3 : index
    %c0_7 = arith.constant 0 : index
    %27 = vector.load %arg3[%c3, %c0_7] : memref<9x128xf32, #tpu.memory_space<vmem>>, vector<1x128xf32>
    %28 = vector.shape_cast %27 : vector<1x128xf32> to vector<128xf32>
    %29 = vector.shape_cast %28 : vector<128xf32> to vector<1x128xf32>
    %30 = vector.broadcast %29 : vector<1x128xf32> to vector<8x128xf32>
    %31 = arith.mulf %26, %30 : vector<8x128xf32>
    %32 = arith.addf %24, %31 : vector<8x128xf32>
    %33 = vector.extract_strided_slice %25 {offsets = [0, 8], sizes = [8, 128], strides = [1, 1]} : vector<8x144xf32> to vector<8x128xf32>
    %c4 = arith.constant 4 : index
    %c0_8 = arith.constant 0 : index
    %34 = vector.load %arg3[%c4, %c0_8] : memref<9x128xf32, #tpu.memory_space<vmem>>, vector<1x128xf32>
    %35 = vector.shape_cast %34 : vector<1x128xf32> to vector<128xf32>
    %36 = vector.shape_cast %35 : vector<128xf32> to vector<1x128xf32>
    %37 = vector.broadcast %36 : vector<1x128xf32> to vector<8x128xf32>
    %38 = arith.mulf %33, %37 : vector<8x128xf32>
    %39 = arith.addf %32, %38 : vector<8x128xf32>
    %40 = vector.extract_strided_slice %25 {offsets = [0, 16], sizes = [8, 128], strides = [1, 1]} : vector<8x144xf32> to vector<8x128xf32>
    %c5 = arith.constant 5 : index
    %c0_9 = arith.constant 0 : index
    %41 = vector.load %arg3[%c5, %c0_9] : memref<9x128xf32, #tpu.memory_space<vmem>>, vector<1x128xf32>
    %42 = vector.shape_cast %41 : vector<1x128xf32> to vector<128xf32>
    %43 = vector.shape_cast %42 : vector<128xf32> to vector<1x128xf32>
    %44 = vector.broadcast %43 : vector<1x128xf32> to vector<8x128xf32>
    %45 = arith.mulf %40, %44 : vector<8x128xf32>
    %46 = arith.addf %39, %45 : vector<8x128xf32>
    %47 = vector.extract_strided_slice %1 {offsets = [2, 0], sizes = [8, 144], strides = [1, 1]} : vector<10x144xf32> to vector<8x144xf32>
    %48 = vector.extract_strided_slice %47 {offsets = [0, 0], sizes = [8, 128], strides = [1, 1]} : vector<8x144xf32> to vector<8x128xf32>
    %c6 = arith.constant 6 : index
    %c0_10 = arith.constant 0 : index
    %49 = vector.load %arg3[%c6, %c0_10] : memref<9x128xf32, #tpu.memory_space<vmem>>, vector<1x128xf32>
    %50 = vector.shape_cast %49 : vector<1x128xf32> to vector<128xf32>
    %51 = vector.shape_cast %50 : vector<128xf32> to vector<1x128xf32>
    %52 = vector.broadcast %51 : vector<1x128xf32> to vector<8x128xf32>
    %53 = arith.mulf %48, %52 : vector<8x128xf32>
    %54 = arith.addf %46, %53 : vector<8x128xf32>
    %55 = vector.extract_strided_slice %47 {offsets = [0, 8], sizes = [8, 128], strides = [1, 1]} : vector<8x144xf32> to vector<8x128xf32>
    %c7 = arith.constant 7 : index
    %c0_11 = arith.constant 0 : index
    %56 = vector.load %arg3[%c7, %c0_11] : memref<9x128xf32, #tpu.memory_space<vmem>>, vector<1x128xf32>
    %57 = vector.shape_cast %56 : vector<1x128xf32> to vector<128xf32>
    %58 = vector.shape_cast %57 : vector<128xf32> to vector<1x128xf32>
    %59 = vector.broadcast %58 : vector<1x128xf32> to vector<8x128xf32>
    %60 = arith.mulf %55, %59 : vector<8x128xf32>
    %61 = arith.addf %54, %60 : vector<8x128xf32>
    %62 = vector.extract_strided_slice %47 {offsets = [0, 16], sizes = [8, 128], strides = [1, 1]} : vector<8x144xf32> to vector<8x128xf32>
    %c8 = arith.constant 8 : index
    %c0_12 = arith.constant 0 : index
    %63 = vector.load %arg3[%c8, %c0_12] : memref<9x128xf32, #tpu.memory_space<vmem>>, vector<1x128xf32>
    %64 = vector.shape_cast %63 : vector<1x128xf32> to vector<128xf32>
    %65 = vector.shape_cast %64 : vector<128xf32> to vector<1x128xf32>
    %66 = vector.broadcast %65 : vector<1x128xf32> to vector<8x128xf32>
    %67 = arith.mulf %62, %66 : vector<8x128xf32>
    %68 = arith.addf %61, %67 : vector<8x128xf32>
    %c0_13 = arith.constant 0 : index
    %c0_14 = arith.constant 0 : index
    %69 = vector.load %arg4[%c0_13, %c0_14] : memref<1x128xf32, #tpu.memory_space<vmem>>, vector<1x128xf32>
    %70 = vector.shape_cast %69 : vector<1x128xf32> to vector<128xf32>
    %71 = vector.shape_cast %70 : vector<128xf32> to vector<1x128xf32>
    %72 = vector.broadcast %71 : vector<1x128xf32> to vector<8x128xf32>
    %73 = arith.addf %68, %72 : vector<8x128xf32>
    %cst_15 = arith.constant 0.000000e+00 : f32
    %74 = vector.broadcast %cst_15 : f32 to vector<8x128xf32>
    %75 = arith.maximumf %73, %74 : vector<8x128xf32>
    %c0_16 = arith.constant 0 : index
    %c0_17 = arith.constant 0 : index
    %76 = vector.load %arg5[%c0_16, %c0_17] : memref<128x256xf32, #tpu.memory_space<vmem>>, vector<128x256xf32>
    %cst_18 = arith.constant dense<0.000000e+00> : vector<8x256xf32>
    %77 = tpu.matmul %75, %76, %cst_18 {dimension_numbers = #tpu.dot_dimension_numbers<[1], [0], [0], [1], [0, 0, 1, 1], [], []>} : vector<8x128xf32>, vector<128x256xf32>, vector<8x256xf32> -> vector<8x256xf32>
    %c0_19 = arith.constant 0 : index
    %c0_20 = arith.constant 0 : index
    %78 = vector.load %arg6[%c0_19, %c0_20] : memref<1x256xf32, #tpu.memory_space<vmem>>, vector<1x256xf32>
    %79 = vector.shape_cast %78 : vector<1x256xf32> to vector<256xf32>
    %80 = vector.shape_cast %79 : vector<256xf32> to vector<1x256xf32>
    %81 = vector.broadcast %80 : vector<1x256xf32> to vector<8x256xf32>
    %82 = arith.addf %77, %81 : vector<8x256xf32>
    %cst_21 = arith.constant 0.000000e+00 : f32
    %83 = vector.broadcast %cst_21 : f32 to vector<8x256xf32>
    %84 = arith.maximumf %82, %83 : vector<8x256xf32>
    %c0_22 = arith.constant 0 : index
    %c0_23 = arith.constant 0 : index
    %c0_24 = arith.constant 0 : index
    %85 = vector.load %arg7[%c0_22, %c0_23, %c0_24] : memref<1x8x256xf32, #tpu.memory_space<vmem>>, vector<1x8x256xf32>
    %86 = vector.shape_cast %85 : vector<1x8x256xf32> to vector<8x256xf32>
    %87 = vector.shape_cast %84 : vector<8x256xf32> to vector<1x8x256xf32>
    tpu.vector_store %arg7[%c0_22, %c0_23, %c0_24], %87 {strides = array<i32>} : memref<1x8x256xf32, #tpu.memory_space<vmem>>, vector<1x8x256xf32>,
    return
  }
  func.func @transform_0(%arg0: i32, %arg1: i32) -> (i32, i32, i32, i32) {
    %c0_i32 = arith.constant 0 : i32
    %c0_i32_0 = arith.constant 0 : i32
    %c0_i32_1 = arith.constant 0 : i32
    return %arg0, %arg1, %c0_i32, %c0_i32_0 : i32, i32, i32, i32
  }
  func.func @transform_1(%arg0: i32, %arg1: i32) -> (i32, i32) {
    %c0_i32 = arith.constant 0 : i32
    %c0_i32_0 = arith.constant 0 : i32
    %c0_i32_1 = arith.constant 0 : i32
    return %c0_i32, %c0_i32_0 : i32, i32
  }
  func.func @transform_2(%arg0: i32, %arg1: i32) -> (i32, i32) {
    %c0_i32 = arith.constant 0 : i32
    %c0_i32_0 = arith.constant 0 : i32
    %c0_i32_1 = arith.constant 0 : i32
    return %c0_i32, %c0_i32_0 : i32, i32
  }
  func.func @transform_3(%arg0: i32, %arg1: i32) -> (i32, i32) {
    %c0_i32 = arith.constant 0 : i32
    %c0_i32_0 = arith.constant 0 : i32
    %c0_i32_1 = arith.constant 0 : i32
    return %c0_i32, %c0_i32_0 : i32, i32
  }
  func.func @transform_4(%arg0: i32, %arg1: i32) -> (i32, i32) {
    %c0_i32 = arith.constant 0 : i32
    %c0_i32_0 = arith.constant 0 : i32
    %c0_i32_1 = arith.constant 0 : i32
    return %c0_i32, %c0_i32_0 : i32, i32
  }
  func.func @transform_5(%arg0: i32, %arg1: i32) -> (i32, i32, i32) {
    %c0_i32 = arith.constant 0 : i32
    %c0_i32_0 = arith.constant 0 : i32
    return %arg0, %arg1, %c0_i32 : i32, i32, i32
  }
}

</mosaic_0001>

<llo_original>
// kernel: tpu_custom_call.1
$region0: #{tpu_custom_call.1}
  #allocation0 [shape = 'u32[]', space=smem, size = 0x4, offset = 0x4, fixed_abs, tag = 'smem constant byte address 0x4 - core index']
  #allocation1 [shape = 'u32[144,128]{1,0:T(1,128)}', space=vmem, size = 0x12000, scoped, tag = 'internal scratch']
  %s0 = inlined_call_operand.vmem [shape: f32[2,2,10,144], index: 0, kind: input, shape index: {}]
  %s1 = inlined_call_operand.vmem [shape: f32[9,128], index: 1, kind: input, shape index: {}]
  %s2 = inlined_call_operand.vmem [shape: f32[1,128], index: 2, kind: input, shape index: {}]
  %s3 = inlined_call_operand.hbm [shape: f32[128,256], index: 3, kind: input, shape index: {}]
  %s4 = inlined_call_operand.vmem [shape: f32[1,256], index: 4, kind: input, shape index: {}]
  %s5 = inlined_call_operand.hbm [shape: f32[2,16,256], index: 5, kind: output, shape index: {}]
  %s6 = sld [smem:[#allocation0]]
  $region57: #{tpu_custom_call.1} parent=0
    _
  %s8 = ssub.s32 1, %s6
  %s9 = scalar_select 0, %s8, %s6
  $region1: #{tpu_custom_call.1} parent=0
    #allocation2 [shape = 'u8[131072]{0}', space=vmem, size = 0x20000, scoped, tag = 'input window, operand 3, single buffered']
    #allocation3 [shape = 's32[2]{0}', space=sflag, size = 0x8, scoped, tag = 'scoped memory for tpu_custom_call.1']
    #allocation4 [shape = 's32[2]{0}', space=sflag, size = 0x8, scoped, tag = 'scoped memory for tpu_custom_call.1']
    #allocation5 [shape = 'u8[16384]{0}', space=vmem, size = 0x4000, scoped, tag = 'output window, operand 0']
    %10 = vsyncpa [#allocation3], 0
    %11 = vsyncpa [#allocation4], 0
    %s12 = scalar_lea.sflag [#allocation4], 1
    %13 = vsyncpa %s12, 0
    loop: start=0, step=1, limit=6
    $region2: #{tpu_custom_call.1} parent=1 // loop_pre_header
      _
    $region3: #{tpu_custom_call.1} parent=1 // loop_header
      %s15 = sphi 0, %s19
      %p16 = scmp.ge.s32.totalorder %s15, 6
      %s22 = sphi 0, %s34
      %s23 = sphi 0, %s30
      %s24 = sphi 0, %s22
      %s25 = sphi 0, %s23
      %s26 = sphi 0, %s24
      %s27 = sphi 0, %s25
      %s39 = sphi 0, %s41
      %s42 = sphi 0, %s39
      %s43 = sphi 0, %s42
      %s59 = sphi 0, %s43
      %s63 = sphi 0, %s63
      %s65 = sphi 0, %s63
      %s66 = sphi 0, %s65
      %s80 = sphi 0, %s66
      %s84 = sphi 0, %s84
      %s86 = sphi 0, %s84
      %s87 = sphi 0, %s86
      %s101 = sphi 0, %s87
      %s105 = sphi 0, %s105
      %s107 = sphi 0, %s105
      %s108 = sphi 0, %s107
      %s122 = sphi 0, %s108
      %s126 = sphi 0, %s126
      %s128 = sphi 0, %s126
      %s129 = sphi 0, %s128
      %s143 = sphi 0, %s129
      %s151 = sphi 0, %s153
      %s154 = sphi 0, %s151
      %s155 = sphi 0, %s154
      %s171 = sphi 0, %s155
    $region4: #{tpu_custom_call.1} parent=1 // loop_header_branch
      %18 = sbr.rel (%p16) target = $region8
    $region5: #{tpu_custom_call.1} parent=1 // loop_body
      %s20 = ssub.s32 %s15, 1
      %s21 = ssub.s32 %s15, 2
      %s28 = sadd.s32 1, %s23
      %p29 = scmp.ge.s32.totalorder %s28, 2
      %s30 = scalar_select %p29, 0, %s28
      %s31 = sadd.s32 1, %s22
      %s32 = scalar_select %p29, %s31, %s22
      %p33 = scmp.ge.s32.totalorder %s32, 2
      %s34 = scalar_select %p33, 0, %s32
      %s35 = ssub.s32 %s22, %s34
      %s36 = ssub.s32 %s23, %s30
      %s37 = sor.u32 %s35, %s36
      %p38 = scmp.eq.s32.totalorder %s37, 0
      %s40 = sadd.s32 %s39, 1
      %s41 = scalar_select %p38, %s39, %s40
      %p44 = pneg %p38
      %p45 = scmp.eq.s32.totalorder %s15, 3
      %p46 = por %p44, %p45
      %p47 = scmp.ne.s32.totalorder %s39, %s42
      %p48 = scmp.eq.s32.totalorder %s15, 0
      %p49 = por %p47, %p48
      %p50 = scmp.ne.s32.totalorder %s39, %s42
      %p51 = scmp.eq.s32.totalorder %s20, 3
      %p52 = por %p50, %p51
      %p53 = scmp.ne.s32.totalorder %s42, %s43
      %p54 = scmp.eq.s32.totalorder %s20, 0
      %p55 = por %p53, %p54
      %p56 = scmp.ne.s32.totalorder %s42, %s43
      %p57 = scmp.eq.s32.totalorder %s21, 3
      %p58 = por %p56, %p57
      %p60 = scmp.ne.s32.totalorder %s43, %s59
      %p61 = scmp.eq.s32.totalorder %s21, 0
      %p62 = por %p60, %p61
      %s64 = sadd.s32 %s63, 1
      %p67 = scmp.eq.s32.totalorder %s15, 3
      %p68 = scmp.ne.s32.totalorder %s63, %s65
      %p69 = scmp.eq.s32.totalorder %s15, 0
      %p70 = por %p68, %p69
      %p71 = scmp.ne.s32.totalorder %s63, %s65
      %p72 = scmp.eq.s32.totalorder %s20, 3
      %p73 = por %p71, %p72
      %p74 = scmp.ne.s32.totalorder %s65, %s66
      %p75 = scmp.eq.s32.totalorder %s20, 0
      %p76 = por %p74, %p75
      %p77 = scmp.ne.s32.totalorder %s65, %s66
      %p78 = scmp.eq.s32.totalorder %s21, 3
      %p79 = por %p77, %p78
      %p81 = scmp.ne.s32.totalorder %s66, %s80
      %p82 = scmp.eq.s32.totalorder %s21, 0
      %p83 = por %p81, %p82
      %s85 = sadd.s32 %s84, 1
      %p88 = scmp.eq.s32.totalorder %s15, 3
      %p89 = scmp.ne.s32.totalorder %s84, %s86
      %p90 = scmp.eq.s32.totalorder %s15, 0
      %p91 = por %p89, %p90
      %p92 = scmp.ne.s32.totalorder %s84, %s86
      %p93 = scmp.eq.s32.totalorder %s20, 3
      %p94 = por %p92, %p93
      %p95 = scmp.ne.s32.totalorder %s86, %s87
      %p96 = scmp.eq.s32.totalorder %s20, 0
      %p97 = por %p95, %p96
      %p98 = scmp.ne.s32.totalorder %s86, %s87
      %p99 = scmp.eq.s32.totalorder %s21, 3
      %p100 = por %p98, %p99
      %p102 = scmp.ne.s32.totalorder %s87, %s101
      %p103 = scmp.eq.s32.totalorder %s21, 0
      %p104 = por %p102, %p103
      %s106 = sadd.s32 %s105, 1
      %p109 = scmp.eq.s32.totalorder %s15, 3
      %p110 = scmp.ne.s32.totalorder %s105, %s107
      %p111 = scmp.eq.s32.totalorder %s15, 0
      %p112 = por %p110, %p111
      %p113 = scmp.ne.s32.totalorder %s105, %s107
      %p114 = scmp.eq.s32.totalorder %s20, 3
      %p115 = por %p113, %p114
      %p116 = scmp.ne.s32.totalorder %s107, %s108
      %p117 = scmp.eq.s32.totalorder %s20, 0
      %p118 = por %p116, %p117
      %p119 = scmp.ne.s32.totalorder %s107, %s108
      %p120 = scmp.eq.s32.totalorder %s21, 3
      %p121 = por %p119, %p120
      %p123 = scmp.ne.s32.totalorder %s108, %s122
      %p124 = scmp.eq.s32.totalorder %s21, 0
      %p125 = por %p123, %p124
      %s127 = sadd.s32 %s126, 1
      %p130 = scmp.eq.s32.totalorder %s15, 3
      %p131 = scmp.ne.s32.totalorder %s126, %s128
      %p132 = scmp.eq.s32.totalorder %s15, 0
      %p133 = por %p131, %p132
      %p134 = scmp.ne.s32.totalorder %s126, %s128
      %p135 = scmp.eq.s32.totalorder %s20, 3
      %p136 = por %p134, %p135
      %p137 = scmp.ne.s32.totalorder %s128, %s129
      %p138 = scmp.eq.s32.totalorder %s20, 0
      %p139 = por %p137, %p138
      %p140 = scmp.ne.s32.totalorder %s128, %s129
      %p141 = scmp.eq.s32.totalorder %s21, 3
      %p142 = por %p140, %p141
      %p144 = scmp.ne.s32.totalorder %s129, %s143
      %p145 = scmp.eq.s32.totalorder %s21, 0
      %p146 = por %p144, %p145
      %s147 = ssub.s32 %s22, %s34
      %s148 = ssub.s32 %s23, %s30
      %s149 = sor.u32 %s147, %s148
      %p150 = scmp.eq.s32.totalorder %s149, 0
      %s152 = sadd.s32 %s151, 1
      %s153 = scalar_select %p150, %s151, %s152
      %p156 = pneg %p150
      %p157 = scmp.eq.s32.totalorder %s15, 3
      %p158 = por %p156, %p157
      %p159 = scmp.ne.s32.totalorder %s151, %s154
      %p160 = scmp.eq.s32.totalorder %s15, 0
      %p161 = por %p159, %p160
      %p162 = scmp.ne.s32.totalorder %s151, %s154
      %p163 = scmp.eq.s32.totalorder %s20, 3
      %p164 = por %p162, %p163
      %p165 = scmp.ne.s32.totalorder %s154, %s155
      %p166 = scmp.eq.s32.totalorder %s20, 0
      %p167 = por %p165, %p166
      %p168 = scmp.ne.s32.totalorder %s154, %s155
      %p169 = scmp.eq.s32.totalorder %s21, 3
      %p170 = por %p168, %p169
      %p172 = scmp.ne.s32.totalorder %s155, %s171
      %p173 = scmp.eq.s32.totalorder %s21, 0
      %p174 = por %p172, %p173
      %p175 = scmp.le.s32.totalorder 1, %s15
      %p176 = scmp.lt.s32.totalorder %s15, 5
      %p177 = pnand %p175, %p176
      %p178 = pneg %p177
      // Predicated region
      $region9: #{tpu_custom_call.1} parent=5 // pred_check
        _
      $region10: #{tpu_custom_call.1} parent=5 // pred_check_branch
        %180 = sbr.rel (%p177) target = $region12
      $region11: #{tpu_custom_call.1} parent=5 // pred_region
        %s181 = ssub.s32 %s15, 1
        // Predicated region
        $region13: #{tpu_custom_call.1} parent=11 // pred_check
          %p182 = pneg %p76
        $region14: #{tpu_custom_call.1} parent=11 // pred_check_branch
          %184 = sbr.rel (%p182) target = $region16
        $region15: #{tpu_custom_call.1} parent=11 // pred_region
          _
        $region16: #{tpu_custom_call.1} parent=11 // pred_fallthru
          _
        // Predicated region
        $region17: #{tpu_custom_call.1} parent=11 // pred_check
          %p185 = pneg %p97
        $region18: #{tpu_custom_call.1} parent=11 // pred_check_branch
          %187 = sbr.rel (%p185) target = $region20
        $region19: #{tpu_custom_call.1} parent=11 // pred_region
          _
        $region20: #{tpu_custom_call.1} parent=11 // pred_fallthru
          _
        // Predicated region
        $region21: #{tpu_custom_call.1} parent=11 // pred_check
          %p188 = pneg %p118
        $region22: #{tpu_custom_call.1} parent=11 // pred_check_branch
          %190 = sbr.rel (%p188) target = $region24
        $region23: #{tpu_custom_call.1} parent=11 // pred_region
          %s192 = ssub.s32 4096, 4096
          %193 = vsyncadd [#allocation3], %s192
          %s194 = sshll.u32 [#allocation2], 4
          %s195 = int_to_ptr.vmem [resolvable:$true] %s194
          %200 = dma.hbm_to_vmem [thread:$0]  %s3, 4096, %s195, [#allocation3], 256, 256, 16
        $region24: #{tpu_custom_call.1} parent=11 // pred_fallthru
          _
        // Predicated region
        $region25: #{tpu_custom_call.1} parent=11 // pred_check
          %p201 = pneg %p139
        $region26: #{tpu_custom_call.1} parent=11 // pred_check_branch
          %203 = sbr.rel (%p201) target = $region28
        $region27: #{tpu_custom_call.1} parent=11 // pred_region
          _
        $region28: #{tpu_custom_call.1} parent=11 // pred_fallthru
          _
      $region12: #{tpu_custom_call.1} parent=5 // pred_fallthru
        _
      %p204 = scmp.lt.s32.totalorder %s15, 4
      // Predicated region
      $region29: #{tpu_custom_call.1} parent=5 // pred_check
        %p205 = pneg %p204
      $region30: #{tpu_custom_call.1} parent=5 // pred_check_branch
        %207 = sbr.rel (%p205) target = $region32
      $region31: #{tpu_custom_call.1} parent=5 // pred_region
        // Predicated region
        $region33: #{tpu_custom_call.1} parent=31 // pred_check
          %p208 = pneg %p49
        $region34: #{tpu_custom_call.1} parent=31 // pred_check_branch
          %210 = sbr.rel (%p208) target = $region36
        $region35: #{tpu_custom_call.1} parent=31 // pred_region
          %p211 = scmp.lt.s32.totalorder %s22, 1
          %s212 = scalar_select %p211, %s22, 1
          %p213 = scmp.lt.s32.totalorder %s23, 1
          %s214 = scalar_select %p213, %s23, 1
          %s215 = smul.addr %s214, 4
          %s216 = smul.addr %s212, 8
          %s217 = sadd.s32 %s215, %s216
          %s218 = smul.addr %s217, 8
          %s219 = scalar_lea.vmem %s0, %s218
        $region36: #{tpu_custom_call.1} parent=31 // pred_fallthru
          _
      $region32: #{tpu_custom_call.1} parent=5 // pred_fallthru
        _
      %p220 = scmp.le.s32.totalorder 1, %s15
      %p221 = scmp.lt.s32.totalorder %s15, 5
      %p222 = pnand %p220, %p221
      %p223 = pneg %p222
      // Predicated region
      $region37: #{tpu_custom_call.1} parent=5 // pred_check
        _
      $region38: #{tpu_custom_call.1} parent=5 // pred_check_branch
        %225 = sbr.rel (%p222) target = $region40
      $region39: #{tpu_custom_call.1} parent=5 // pred_region
        %s226 = ssub.s32 %s15, 1
        // Predicated region
        $region41: #{tpu_custom_call.1} parent=39 // pred_check
          %p227 = pneg %p118
        $region42: #{tpu_custom_call.1} parent=39 // pred_check_branch
          %229 = sbr.rel (%p227) target = $region44
        $region43: #{tpu_custom_call.1} parent=39 // pred_region
          %230 = dma.done [#allocation3], 4096
        $region44: #{tpu_custom_call.1} parent=39 // pred_fallthru
          _
        %p231 = scmp.lt.s32.totalorder %s24, 1
        %s232 = scalar_select %p231, %s24, 1
        %p233 = scmp.lt.s32.totalorder %s25, 1
        %s234 = scalar_select %p233, %s25, 1
        %s235 = smul.addr %s234, 4
        %s236 = smul.addr %s232, 8
        %s237 = sadd.s32 %s235, %s236
        %s238 = smul.addr %s237, 8
        %s239 = scalar_lea.vmem %s0, %s238
        %p240 = pneg %p55
        %p241 = pneg %p52
        %p242 = pneg %p76
        %p243 = pneg %p73
        %p244 = pneg %p97
        %p245 = pneg %p94
        %p246 = pneg %p118
        %p247 = pneg %p115
        %p248 = pneg %p139
        %p249 = pneg %p136
        %p250 = pneg %p167
        %p251 = pneg %p164
        %s252 = sand.u32 %s154, 1
        %s253 = scalar_lea.sflag [#allocation4], %s252
        %s254 = sand.u32 %s154, 1
        %s255 = smul.addr %s254, 16
        %s256 = scalar_lea.vmem [#allocation5], %s255
        %p257 = scmp.lt.s32.totalorder %s24, 1
        %s258 = scalar_select %p257, %s24, 1
        %p259 = scmp.lt.s32.totalorder %s25, 1
        %s260 = scalar_select %p259, %s25, 1
        %s261 = smul.addr %s260, 4
        %s262 = smul.addr %s258, 8
        %s263 = sadd.s32 %s261, %s262
        %s264 = smul.addr %s263, 8
        %s265 = scalar_lea.vmem %s0, %s264
        %v266 = vld [vmem:[%s265] sm:$0xff]
        %v267 = vld [vmem:[%s265 + $0x8] sm:$0xff]
        %v268 = vld [vmem:[%s265 + $0x10] sm:$0x3]
        %v269 = vld [vmem:[%s265 + $0x18] sm:$0x3]
        %v270 = vld [vmem:[%s1] sm:$0x1]
        %v271 = vlaneseq
        %v272 = vshrl.u32 %v271, 7
        %v273 = vsub.s32 0, %v272
        %v274 = vrot.slane %v270, %v273
        %v275 = vmul.f32 %v266, %v274
        %v276 = vadd.f32 %v275, 0.0
        %v277 = vld [vmem:[%s1 + $0x1] sm:$0x1]
        %v278 = vlaneseq
        %v279 = vshrl.u32 %v278, 7
        %v280 = vsub.s32 0, %v279
        %v281 = vrot.slane %v277, %v280
        %283 = vrot.lane.b32.xlu0 %v281, 8
        %v284 = vpop.permute.xlu0 %283
        %v286 = vmul.f32 %v266, %v284
        %v287 = vmul.f32 %v267, %v284
        %290 = vrot.lane.b32.xlu0 %v286, 120
        %v291 = vpop.permute.xlu0 %290
        %292 = vrot.lane.b32.xlu0 %v287, 120
        %v293 = vpop.permute.xlu0 %292
        %vm294 = vcmask 982016
        %v295 = vsel %vm294, %v291, %v293
        %v297 = vadd.f32 %v276, %v295
        %v298 = vld [vmem:[%s1 + $0x2] sm:$0x1]
        %v299 = vlaneseq
        %v300 = vshrl.u32 %v299, 7
        %v301 = vsub.s32 0, %v300
        %v302 = vrot.slane %v298, %v301
        %304 = vrot.lane.b32.xlu0 %v302, 16
        %v305 = vpop.permute.xlu0 %304
        %v307 = vmul.f32 %v266, %v305
        %v308 = vmul.f32 %v267, %v305
        %311 = vrot.lane.b32.xlu0 %v307, 112
        %v312 = vpop.permute.xlu0 %311
        %313 = vrot.lane.b32.xlu0 %v308, 112
        %v314 = vpop.permute.xlu0 %313
        %vm315 = vcmask 916480
        %v316 = vsel %vm315, %v312, %v314
        %v318 = vadd.f32 %v297, %v316
        %v319 = vld [vmem:[%s1 + $0x3] sm:$0x1]
        %v320 = vlaneseq
        %v321 = vshrl.u32 %v320, 7
        %v322 = vsub.s32 0, %v321
        %v323 = vrot.slane %v319, %v322
        %v324 = vmul.f32 %v266, %v323
        %v325 = vmul.f32 %v268, %v323
        %vm328 = vcmask 1046528
        %v329 = vrot.slane %v324, 1
        %v330 = vrot.slane %v325, 1
        %v331 = vsel %vm328, %v329, %v330
        %v333 = vadd.f32 %v318, %v331
        %v334 = vld [vmem:[%s1 + $0x4] sm:$0x1]
        %v335 = vlaneseq
        %v336 = vshrl.u32 %v335, 7
        %v337 = vsub.s32 0, %v336
        %v338 = vrot.slane %v334, %v337
        %340 = vrot.lane.b32.xlu0 %v338, 8
        %v341 = vpop.permute.xlu0 %340
        %v343 = vmul.f32 %v266, %v341
        %v344 = vmul.f32 %v267, %v341
        %v345 = vmul.f32 %v268, %v341
        %v346 = vmul.f32 %v269, %v341
        %v351 = vrot.slane %v343, 1
        %v352 = vrot.slane %v345, 1
        %v353 = vsel %vm328, %v351, %v352
        %v354 = vrot.slane %v344, 1
        %v355 = vrot.slane %v346, 1
        %v356 = vsel %vm328, %v354, %v355
        %357 = vrot.lane.b32.xlu0 %v353, 120
        %v358 = vpop.permute.xlu0 %357
        %359 = vrot.lane.b32.xlu0 %v356, 120
        %v360 = vpop.permute.xlu0 %359
        %v361 = vsel %vm294, %v358, %v360
        %v363 = vadd.f32 %v333, %v361
        %v364 = vld [vmem:[%s1 + $0x5] sm:$0x1]
        %v365 = vlaneseq
        %v366 = vshrl.u32 %v365, 7
        %v367 = vsub.s32 0, %v366
        %v368 = vrot.slane %v364, %v367
        %370 = vrot.lane.b32.xlu0 %v368, 16
        %v371 = vpop.permute.xlu0 %370
        %v373 = vmul.f32 %v266, %v371
        %v374 = vmul.f32 %v267, %v371
        %v375 = vmul.f32 %v268, %v371
        %v376 = vmul.f32 %v269, %v371
        %v381 = vrot.slane %v373, 1
        %v382 = vrot.slane %v375, 1
        %v383 = vsel %vm328, %v381, %v382
        %v384 = vrot.slane %v374, 1
        %v385 = vrot.slane %v376, 1
        %v386 = vsel %vm328, %v384, %v385
        %387 = vrot.lane.b32.xlu0 %v383, 112
        %v388 = vpop.permute.xlu0 %387
        %389 = vrot.lane.b32.xlu0 %v386, 112
        %v390 = vpop.permute.xlu0 %389
        %v391 = vsel %vm315, %v388, %v390
        %v393 = vadd.f32 %v363, %v391
        %v394 = vld [vmem:[%s1 + $0x6] sm:$0x1]
        %v395 = vlaneseq
        %v396 = vshrl.u32 %v395, 7
        %v397 = vsub.s32 0, %v396
        %v398 = vrot.slane %v394, %v397
        %v399 = vmul.f32 %v266, %v398
        %v400 = vmul.f32 %v268, %v398
        %vm403 = vcmask 1045504
        %v404 = vrot.slane %v399, 2
        %v405 = vrot.slane %v400, 2
        %v406 = vsel %vm403, %v404, %v405
        %v408 = vadd.f32 %v393, %v406
        %v409 = vld [vmem:[%s1 + $0x7] sm:$0x1]
        %v410 = vlaneseq
        %v411 = vshrl.u32 %v410, 7
        %v412 = vsub.s32 0, %v411
        %v413 = vrot.slane %v409, %v412
        %415 = vrot.lane.b32.xlu0 %v413, 8
        %v416 = vpop.permute.xlu0 %415
        %v418 = vmul.f32 %v266, %v416
        %v419 = vmul.f32 %v267, %v416
        %v420 = vmul.f32 %v268, %v416
        %v421 = vmul.f32 %v269, %v416
        %v426 = vrot.slane %v418, 2
        %v427 = vrot.slane %v420, 2
        %v428 = vsel %vm403, %v426, %v427
        %v429 = vrot.slane %v419, 2
        %v430 = vrot.slane %v421, 2
        %v431 = vsel %vm403, %v429, %v430
        %432 = vrot.lane.b32.xlu0 %v428, 120
        %v433 = vpop.permute.xlu0 %432
        %434 = vrot.lane.b32.xlu0 %v431, 120
        %v435 = vpop.permute.xlu0 %434
        %v436 = vsel %vm294, %v433, %v435
        %v438 = vadd.f32 %v408, %v436
        %v439 = vld [vmem:[%s1 + $0x8] sm:$0x1]
        %v440 = vlaneseq
        %v441 = vshrl.u32 %v440, 7
        %v442 = vsub.s32 0, %v441
        %v443 = vrot.slane %v439, %v442
        %445 = vrot.lane.b32.xlu0 %v443, 16
        %v446 = vpop.permute.xlu0 %445
        %v448 = vmul.f32 %v266, %v446
        %v449 = vmul.f32 %v267, %v446
        %v450 = vmul.f32 %v268, %v446
        %v451 = vmul.f32 %v269, %v446
        %v456 = vrot.slane %v448, 2
        %v457 = vrot.slane %v450, 2
        %v458 = vsel %vm403, %v456, %v457
        %v459 = vrot.slane %v449, 2
        %v460 = vrot.slane %v451, 2
        %v461 = vsel %vm403, %v459, %v460
        %462 = vrot.lane.b32.xlu0 %v458, 112
        %v463 = vpop.permute.xlu0 %462
        %464 = vrot.lane.b32.xlu0 %v461, 112
        %v465 = vpop.permute.xlu0 %464
        %v466 = vsel %vm315, %v463, %v465
        %v468 = vadd.f32 %v438, %v466
        %v469 = vld [vmem:[%s2] sm:$0x1]
        %v471 = vlaneseq
        %v472 = vshrl.u32 %v471, 7
        %v473 = vsub.s32 0, %v472
        %v474 = vrot.slane %v469, %v473
        %v476 = vadd.f32 %v468, %v474
        %v477 = vmax.f32 %v476, 0.0
        %v478 = vld [vmem:[#allocation2] sm:$0xff]
        %v479 = vld [vmem:[#allocation2 + $0x8] sm:$0xff]
        %v480 = vld [vmem:[#allocation2 + $0x10] sm:$0xff]
        %v481 = vld [vmem:[#allocation2 + $0x18] sm:$0xff]
        %v482 = vld [vmem:[#allocation2 + $0x20] sm:$0xff]
        %v483 = vld [vmem:[#allocation2 + $0x28] sm:$0xff]
        %v484 = vld [vmem:[#allocation2 + $0x30] sm:$0xff]
        %v485 = vld [vmem:[#allocation2 + $0x38] sm:$0xff]
        %v486 = vld [vmem:[#allocation2 + $0x40] sm:$0xff]
        %v487 = vld [vmem:[#allocation2 + $0x48] sm:$0xff]
        %v488 = vld [vmem:[#allocation2 + $0x50] sm:$0xff]
        %v489 = vld [vmem:[#allocation2 + $0x58] sm:$0xff]
        %v490 = vld [vmem:[#allocation2 + $0x60] sm:$0xff]
        %v491 = vld [vmem:[#allocation2 + $0x68] sm:$0xff]
        %v492 = vld [vmem:[#allocation2 + $0x70] sm:$0xff]
        %v493 = vld [vmem:[#allocation2 + $0x78] sm:$0xff]
        %v494 = vld [vmem:[#allocation2 + $0x80] sm:$0xff]
        %v495 = vld [vmem:[#allocation2 + $0x88] sm:$0xff]
        %v496 = vld [vmem:[#allocation2 + $0x90] sm:$0xff]
        %v497 = vld [vmem:[#allocation2 + $0x98] sm:$0xff]
        %v498 = vld [vmem:[#allocation2 + $0xa0] sm:$0xff]
        %v499 = vld [vmem:[#allocation2 + $0xa8] sm:$0xff]
        %v500 = vld [vmem:[#allocation2 + $0xb0] sm:$0xff]
        %v501 = vld [vmem:[#allocation2 + $0xb8] sm:$0xff]
        %v502 = vld [vmem:[#allocation2 + $0xc0] sm:$0xff]
        %v503 = vld [vmem:[#allocation2 + $0xc8] sm:$0xff]
        %v504 = vld [vmem:[#allocation2 + $0xd0] sm:$0xff]
        %v505 = vld [vmem:[#allocation2 + $0xd8] sm:$0xff]
        %v506 = vld [vmem:[#allocation2 + $0xe0] sm:$0xff]
        %v507 = vld [vmem:[#allocation2 + $0xe8] sm:$0xff]
        %v508 = vld [vmem:[#allocation2 + $0xf0] sm:$0xff]
        %v509 = vld [vmem:[#allocation2 + $0xf8] sm:$0xff]
        %v510 = vld [vmem:[%s4] sm:$0x3]
        %v512 = vlaneseq
        %v513 = vshrl.u32 %v512, 7
        %v514 = vsub.s32 0, %v513
        %v515 = vrot.slane %v510, %v514
        %v516 = vlaneseq
        %v517 = vshrl.u32 %v516, 7
        %v518 = vsub.s32 1, %v517
        %v519 = vrot.slane %v510, %v518
        %522 = vmatprep.subr.mxu0 %v479
        %523 = vmatpush1.msra.mxu0 %v478
        %524 = vmatprep.subr.mxu0 %v481
        %525 = vmatpush1.msra.mxu0 %v480
        %526 = vmatprep.subr.mxu0 %v483
        %527 = vmatpush1.msra.mxu0 %v482
        %528 = vmatprep.subr.mxu0 %v485
        %529 = vmatpush1.msra.mxu0 %v484
        %530 = vmatprep.subr.mxu0 %v487
        %531 = vmatpush1.msra.mxu0 %v486
        %532 = vmatprep.subr.mxu0 %v489
        %533 = vmatpush1.msra.mxu0 %v488
        %534 = vmatprep.subr.mxu0 %v491
        %535 = vmatpush1.msra.mxu0 %v490
        %536 = vmatprep.subr.mxu0 %v493
        %537 = vmatpush1.msra.mxu0 %v492
        %538 = vmatprep.subr.mxu0 %v495
        %539 = vmatpush1.msra.mxu0 %v494
        %540 = vmatprep.subr.mxu0 %v497
        %541 = vmatpush1.msra.mxu0 %v496
        %542 = vmatprep.subr.mxu0 %v499
        %543 = vmatpush1.msra.mxu0 %v498
        %544 = vmatprep.subr.mxu0 %v501
        %545 = vmatpush1.msra.mxu0 %v500
        %546 = vmatprep.subr.mxu0 %v503
        %547 = vmatpush1.msra.mxu0 %v502
        %548 = vmatprep.subr.mxu0 %v505
        %549 = vmatpush1.msra.mxu0 %v504
        %550 = vmatprep.subr.mxu0 %v507
        %551 = vmatpush1.msra.mxu0 %v506
        %552 = vmatprep.subr.mxu0 %v509
        %553 = vmatpush1.msra.mxu0 %v508
        %554 = vmatprep.subr.mxu0 0.0
        %555 = vmatpush1.msra.mxu0 0.0
        %556 = vmatprep.subr.mxu0 0.0
        %557 = vmatpush1.msra.mxu0 0.0
        %558 = vmatprep.subr.mxu0 0.0
        %559 = vmatpush1.msra.mxu0 0.0
        %560 = vmatprep.subr.mxu0 0.0
        %561 = vmatpush1.msra.mxu0 0.0
        %562 = vmatprep.subr.mxu0 0.0
        %563 = vmatpush1.msra.mxu0 0.0
        %564 = vmatprep.subr.mxu0 0.0
        %565 = vmatpush1.msra.mxu0 0.0
        %566 = vmatprep.subr.mxu0 0.0
        %567 = vmatpush1.msra.mxu0 0.0
        %568 = vmatprep.subr.mxu0 0.0
        %569 = vmatpush1.msra.mxu0 0.0
        %570 = vmatprep.subr.mxu0 0.0
        %571 = vmatpush1.msra.mxu0 0.0
        %572 = vmatprep.subr.mxu0 0.0
        %573 = vmatpush1.msra.mxu0 0.0
        %574 = vmatprep.subr.mxu0 0.0
        %575 = vmatpush1.msra.mxu0 0.0
        %576 = vmatprep.subr.mxu0 0.0
        %577 = vmatpush1.msra.mxu0 0.0
        %578 = vmatprep.subr.mxu0 0.0
        %579 = vmatpush1.msra.mxu0 0.0
        %580 = vmatprep.subr.mxu0 0.0
        %581 = vmatpush1.msra.mxu0 0.0
        %582 = vmatprep.subr.mxu0 0.0
        %583 = vmatpush1.msra.mxu0 0.0
        %584 = vmatprep.subr.mxu0 0.0
        %585 = vmatpush1.msra.mxu0 0.0
        %586 = vmatprep.mubr.f32.mxu0 0.0
        %587 = vmatmul.mubr.f32.gmra.mrb[0].mxu0 %v477
        %v588 = vpop.f32.mrb[0].mxu0
        %v589 = vadd.f32 %v515, %v588
        %v590 = vpop.f32.mrb[0].mxu0
        %v591 = vadd.f32 %v519, %v590
        %592 = vdwg.mxu0
        %v593 = vmax.f32 %v589, 0.0
        %v594 = vmax.f32 %v591, 0.0
        %595 = vst [vmem:[%s256] sm:$0xff] %v593
        %596 = vst [vmem:[%s256 + $0x8] sm:$0xff] %v594
        %s597 = sand.u32 %s154, 1
        %s598 = scalar_lea.sflag [#allocation4], %s597
        %s599 = sand.u32 %s154, 1
        %s600 = smul.addr %s599, 16
        %s601 = scalar_lea.vmem [#allocation5], %s600
        // Predicated region
        $region45: #{tpu_custom_call.1} parent=39 // pred_check
          %p602 = pneg %p164
        $region46: #{tpu_custom_call.1} parent=39 // pred_check_branch
          %604 = sbr.rel (%p602) target = $region48
        $region47: #{tpu_custom_call.1} parent=39 // pred_region
          %s606 = ssub.s32 256, 256
          %607 = vsyncadd %s598, %s606
          %s608 = smul.addr %s25, 2
          %s609 = smul.addr %s24, 4
          %s610 = sadd.s32 %s608, %s609
          %s611 = smul.addr %s610, 128
          %s612 = scalar_lea.hbm %s5, %s611
          %s614 = sshll.u32 %s601, 4
          %s615 = int_to_ptr.vmem [resolvable:$true] %s614
          %617 = dma.vmem_to_hbm [thread:$0]  %s615, 256, %s612, %s598
        $region48: #{tpu_custom_call.1} parent=39 // pred_fallthru
          _
      $region40: #{tpu_custom_call.1} parent=5 // pred_fallthru
        _
      %p618 = scmp.le.s32.totalorder 2, %s15
      // Predicated region
      $region49: #{tpu_custom_call.1} parent=5 // pred_check
        %p619 = pneg %p618
      $region50: #{tpu_custom_call.1} parent=5 // pred_check_branch
        %621 = sbr.rel (%p619) target = $region52
      $region51: #{tpu_custom_call.1} parent=5 // pred_region
        %s622 = ssub.s32 %s15, 2
        // Predicated region
        $region53: #{tpu_custom_call.1} parent=51 // pred_check
          %p623 = pneg %p170
        $region54: #{tpu_custom_call.1} parent=51 // pred_check_branch
          %625 = sbr.rel (%p623) target = $region56
        $region55: #{tpu_custom_call.1} parent=51 // pred_region
          %s626 = sand.u32 %s155, 1
          %s627 = scalar_lea.sflag [#allocation4], %s626
          %s628 = sand.u32 %s155, 1
          %s629 = smul.addr %s628, 16
          %s630 = scalar_lea.vmem [#allocation5], %s629
          %631 = dma.done %s627, 256
        $region56: #{tpu_custom_call.1} parent=51 // pred_fallthru
          _
      $region52: #{tpu_custom_call.1} parent=5 // pred_fallthru
        _
    $region6: #{tpu_custom_call.1} parent=1 // loop_footer
      %s19 = sadd.s32 1, %s15
    $region7: #{tpu_custom_call.1} parent=1 // loop_footer_branch
      %14 = sbr.rel target = $region3
    $region8: #{tpu_custom_call.1} parent=1 // loop_exit
      _
    %632 = vsyncpa [#allocation3], 1
    %s633 = scalar_lea.sflag [#allocation3], 1
    %634 = vsyncpa %s633, 1
    %635 = vsyncpa [#allocation4], 1
    %s636 = scalar_lea.sflag [#allocation4], 1
    %637 = vsyncpa %s636, 1

</llo_original>
